<compile_context>
chip_gen: v5e
topology: v5e:2x2
jax: 0.10.0
libtpu: 0.0.40
codegen_flags: <defaults>
</compile_context>

<pallas_src>
import jax
import jax.numpy as jnp
from jax.experimental import pallas as pl
from jax.experimental.pallas import tpu as pltpu


def _classifier_kernel(x_ref, convw_ref, convb_ref, projw_ref, projb_ref, out_ref):
    # x_ref:     (bb, T, D)  input block
    # convw_ref: (1, T, 1)   Conv1d weight (kernel_size=1)
    # convb_ref: (1,)        Conv1d bias, SMEM scalar
    # projw_ref: (D, bv)     Linear weight, pre-transposed
    # projb_ref: (1, bv)     Linear bias
    # out_ref:   (bb, bv)
    xb = x_ref[...]                                          # (bb, T, D)
    w = convw_ref[...]                                       # (1, T, 1)

    # Pointwise Conv1d == weighted sum over time_len (+ scalar bias), f32 accumulate.
    y = jnp.sum(xb.astype(jnp.float32) * w.astype(jnp.float32), axis=1)   # (bb, D)
    y = y + convb_ref[0]

    # Linear projection on the MXU, f32 accumulation, vocab on the lane axis.
    acc = jnp.dot(
        y.astype(projw_ref.dtype), projw_ref[...],
        preferred_element_type=jnp.float32,
    )                                                        # (bb, bv) f32
    out_ref[...] = (acc + projb_ref[...]).astype(out_ref.dtype)


def _pick_block(n, target, align):
    """Largest divisor of n that is a multiple of `align` and <= target,
    falling back to the full dimension (full dims are always legal blocks)."""
    if n <= target:
        return n
    c = (max(target, align) // align) * align
    while c >= align:
        if n % c == 0:
            return c
        c -= align
    return n


def classifier_forward(x, conv_w, conv_b, proj_w, proj_b):
    """Pallas equivalent of Classifier.forward.

    x:      (B, time_len, d_model)
    conv_w: (1, time_len, 1)   PyTorch Conv1d weight layout (kernel_size=1)
    conv_b: (1,)
    proj_w: (vocab, d_model)   PyTorch Linear weight layout
    proj_b: (vocab,)
    returns (B, 1, vocab)      # .squeeze(-1) in the reference is a no-op for d_model > 1
    """
    B, T, D = x.shape
    V, D2 = proj_w.shape
    assert D == D2, (D, D2)

    # VMEM-budget-aware batch tile (input tile ~<= 8 MiB), lane-dense vocab tile.
    itemsize = jnp.dtype(x.dtype).itemsize
    bytes_per_batch_row = max(1, T * D * itemsize)
    bb_target = max(8, min(512, (8 * 1024 * 1024) // bytes_per_batch_row))
    bb = _pick_block(B, bb_target, 8)       # output sublane (batch) tile
    bv = _pick_block(V, 512, 128)           # output lane (vocab) tile

    projw_t = proj_w.T.astype(x.dtype)                       # (D, V), lane-major for the MXU
    projb_2d = proj_b.reshape(1, V).astype(jnp.float32)
    convw_3d = conv_w.reshape(1, T, 1).astype(x.dtype)
    convb_1d = conv_b.reshape(1).astype(jnp.float32)

    grid = (B // bb, V // bv)

    out2d = pl.pallas_call(
        _classifier_kernel,
        out_shape=jax.ShapeDtypeStruct((B, V), x.dtype),
        grid=grid,
        in_specs=[
            pl.BlockSpec((bb, T, D), lambda i, j: (i, 0, 0)),
            pl.BlockSpec((1, T, 1), lambda i, j: (0, 0, 0)),
            pl.BlockSpec(memory_space=pltpu.MemorySpace.SMEM),
            pl.BlockSpec((D, bv), lambda i, j: (0, j)),
            pl.BlockSpec((1, bv), lambda i, j: (0, j)),
        ],
        out_specs=pl.BlockSpec((bb, bv), lambda i, j: (i, j)),
        compiler_params=pltpu.CompilerParams(
            dimension_semantics=("parallel", "parallel"),
        ),
    )(x, convw_3d, convb_1d, projw_t, projb_2d)

    return out2d.reshape(B, 1, V)


if __name__ == "__main__":
    # Small shapes consistent with the module: batch=2, time_len(seq)=8,
    # d_model(hidden)=32, vocab=32.
    d_model, vocab, time_len = 32, 32, 8
    batch = 2

    key = jax.random.PRNGKey(0)
    k_x, k_cw, k_cb, k_pw, k_pb = jax.random.split(key, 5)

    x = jax.random.normal(k_x, (batch, time_len, d_model), dtype=jnp.float32)
    conv_w = jax.random.normal(k_cw, (1, time_len, 1), dtype=jnp.float32) * 0.3
    conv_b = jax.random.normal(k_cb, (1,), dtype=jnp.float32) * 0.1
    proj_w = jax.random.normal(k_pw, (vocab, d_model), dtype=jnp.float32) * 0.2
    proj_b = jax.random.normal(k_pb, (vocab,), dtype=jnp.float32) * 0.1

    out = classifier_forward(x, conv_w, conv_b, proj_w, proj_b)
    out = jax.block_until_ready(out)

    # Pure-JAX reference mirroring the PyTorch module.
    y_ref = jnp.einsum("btd,t->bd", x, conv_w[0, :, 0]) + conv_b[0]    # Conv1d(k=1)
    ref = (y_ref @ proj_w.T + proj_b)[:, None, :]                      # Linear -> (B, 1, V)

    assert out.shape == (batch, 1, vocab), out.shape
    assert jnp.allclose(out, ref, atol=1e-4, rtol=1e-4), float(
        jnp.max(jnp.abs(out - ref))
    )

    print("KERNEL_OK")
</pallas_src>

<mosaic_0001>
module attributes {stable_mosaic.version = 11 : i64} {
  func.func @_classifier_kernel(%arg0: i32, %arg1: i32, %arg2: memref<2x8x32xf32, #tpu.memory_space<vmem>>, %arg3: memref<1x8x1xf32, #tpu.memory_space<vmem>>, %arg4: memref<1xf32, #tpu.memory_space<smem>>, %arg5: memref<32x32xf32, #tpu.memory_space<vmem>>, %arg6: memref<1x32xf32, #tpu.memory_space<vmem>>, %arg7: memref<2x32xf32, #tpu.memory_space<vmem>>) attributes {dimension_semantics = [#tpu.dimension_semantics<parallel>, #tpu.dimension_semantics<parallel>], iteration_bounds = array<i64: 1, 1>, scalar_prefetch = 0 : i64, scratch_operands = 0 : i64, tpu.core_type = #tpu.core_type<tc>, window_params = [{transform_indices = @transform_0, window_bounds = array<i64: 2, 8, 32>}, {pipeline_mode = #tpu.pipeline_mode<synchronous>, transform_indices = @transform_1, window_bounds = array<i64: 1, 8, 1>}, {transform_indices = @transform_2, window_bounds = array<i64: 1>}, {transform_indices = @transform_3, window_bounds = array<i64: 32, 32>}, {transform_indices = @transform_4, window_bounds = array<i64: 1, 32>}, {transform_indices = @transform_5, window_bounds = array<i64: 2, 32>}]} {
    %c0 = arith.constant 0 : index
    %c0_0 = arith.constant 0 : index
    %c0_1 = arith.constant 0 : index
    %0 = vector.load %arg2[%c0, %c0_0, %c0_1] : memref<2x8x32xf32, #tpu.memory_space<vmem>>, vector<2x8x32xf32>
    %c0_2 = arith.constant 0 : index
    %c0_3 = arith.constant 0 : index
    %c0_4 = arith.constant 0 : index
    %1 = vector.load %arg3[%c0_2, %c0_3, %c0_4] : memref<1x8x1xf32, #tpu.memory_space<vmem>>, vector<1x8x1xf32>
    %2 = vector.broadcast %1 : vector<1x8x1xf32> to vector<2x8x32xf32>
    %3 = arith.mulf %0, %2 : vector<2x8x32xf32>
    %cst = arith.constant dense<0.000000e+00> : vector<2x32xf32>
    %4 = vector.multi_reduction <add>, %3, %cst [1] : vector<2x8x32xf32> to vector<2x32xf32>
    %c0_5 = arith.constant 0 : index
    %5 = memref.load %arg4[%c0_5] : memref<1xf32, #tpu.memory_space<smem>>
    %6 = vector.broadcast %5 : f32 to vector<2x32xf32>
    %7 = arith.addf %4, %6 : vector<2x32xf32>
    %c0_6 = arith.constant 0 : index
    %c0_7 = arith.constant 0 : index
    %8 = vector.load %arg5[%c0_6, %c0_7] : memref<32x32xf32, #tpu.memory_space<vmem>>, vector<32x32xf32>
    %cst_8 = arith.constant dense<0.000000e+00> : vector<2x32xf32>
    %9 = tpu.matmul %7, %8, %cst_8 {dimension_numbers = #tpu.dot_dimension_numbers<[1], [0], [0], [1], [0, 0, 1, 1], [], []>} : vector<2x32xf32>, vector<32x32xf32>, vector<2x32xf32> -> vector<2x32xf32>
    %c0_9 = arith.constant 0 : index
    %c0_10 = arith.constant 0 : index
    %10 = vector.load %arg6[%c0_9, %c0_10] : memref<1x32xf32, #tpu.memory_space<vmem>>, vector<1x32xf32>
    %11 = vector.broadcast %10 : vector<1x32xf32> to vector<2x32xf32>
    %12 = arith.addf %9, %11 : vector<2x32xf32>
    %c0_11 = arith.constant 0 : index
    %c0_12 = arith.constant 0 : index
    %13 = vector.load %arg7[%c0_11, %c0_12] : memref<2x32xf32, #tpu.memory_space<vmem>>, vector<2x32xf32>
    tpu.vector_store %arg7[%c0_11, %c0_12], %12 {strides = array<i32>} : memref<2x32xf32, #tpu.memory_space<vmem>>, vector<2x32xf32>,
    return
  }
  func.func @transform_0(%arg0: i32, %arg1: i32) -> (i32, i32, i32) {
    %c0_i32 = arith.constant 0 : i32
    %c0_i32_0 = arith.constant 0 : i32
    %c0_i32_1 = arith.constant 0 : i32
    return %arg0, %c0_i32, %c0_i32_0 : i32, i32, i32
  }
  func.func @transform_1(%arg0: i32, %arg1: i32) -> (i32, i32, i32) {
    %c0_i32 = arith.constant 0 : i32
    %c0_i32_0 = arith.constant 0 : i32
    %c0_i32_1 = arith.constant 0 : i32
    %c0_i32_2 = arith.constant 0 : i32
    return %c0_i32, %c0_i32_0, %c0_i32_1 : i32, i32, i32
  }
  func.func @transform_2(%arg0: i32, %arg1: i32) -> i32 {
    %c0_i32 = arith.constant 0 : i32
    %c0_i32_0 = arith.constant 0 : i32
    return %c0_i32 : i32
  }
  func.func @transform_3(%arg0: i32, %arg1: i32) -> (i32, i32) {
    %c0_i32 = arith.constant 0 : i32
    %c0_i32_0 = arith.constant 0 : i32
    return %c0_i32, %arg1 : i32, i32
  }
  func.func @transform_4(%arg0: i32, %arg1: i32) -> (i32, i32) {
    %c0_i32 = arith.constant 0 : i32
    %c0_i32_0 = arith.constant 0 : i32
    return %c0_i32, %arg1 : i32, i32
  }
  func.func @transform_5(%arg0: i32, %arg1: i32) -> (i32, i32) {
    %c0_i32 = arith.constant 0 : i32
    return %arg0, %arg1 : i32, i32
  }
}

</mosaic_0001>

<llo_original>
// kernel: tpu_custom_call.1
$region0: #{tpu_custom_call.1}
  #allocation0 [shape = 'u32[]', space=smem, size = 0x4, offset = 0x4, fixed_abs, tag = 'smem constant byte address 0x4 - core index']
  #allocation1 [shape = 'u32[72,128]{1,0:T(1,128)}', space=vmem, size = 0x9000, scoped, tag = 'internal scratch']
  #allocation2 [shape = 'f32[1]{0:T(128)S(6)}', space=smem, size = 0x200, scoped, tag = 'scoped memory for tpu_custom_call.1']
  %s0 = inlined_call_operand.hbm [shape: f32[2,8,32], index: 0, kind: input, shape index: {}]
  %s1 = inlined_call_operand.vmem [shape: f32[1,8,1], index: 1, kind: input, shape index: {}]
  %s2 = inlined_call_operand.<no memory space> [shape: f32[1], index: 2, kind: input, shape index: {}]
  %s3 = inlined_call_operand.hbm [shape: f32[32,32], index: 3, kind: input, shape index: {}]
  %s4 = inlined_call_operand.vmem [shape: f32[1,32], index: 4, kind: input, shape index: {}]
  %s5 = inlined_call_operand.hbm [shape: f32[2,32], index: 5, kind: output, shape index: {}]
  %s6 = sld [smem:[#allocation0]]
  $region38: #{tpu_custom_call.1} parent=0
    _
  %s8 = ssub.s32 1, %s6
  %s9 = scalar_select 0, %s8, %s6
  %10 = sst [smem:[#allocation2]] %s2
  $region1: #{tpu_custom_call.1} parent=0
    #allocation3 [shape = 'u8[8192]{0}', space=vmem, size = 0x2000, scoped, tag = 'input window, operand 0, single buffered']
    #allocation4 [shape = 's32[1]{0}', space=sflag, size = 0x4, scoped, tag = 'scoped memory for tpu_custom_call.1']
    #allocation5 [shape = 's32[1]{0}', space=sflag, size = 0x4, scoped, tag = 'scoped memory for tpu_custom_call.1']
    #allocation6 [shape = 'u8[16384]{0}', space=vmem, size = 0x4000, scoped, tag = 'input window, operand 3, single buffered']
    #allocation7 [shape = 's32[1]{0}', space=sflag, size = 0x4, scoped, tag = 'scoped memory for tpu_custom_call.1']
    #allocation8 [shape = 'u8[1024]{0}', space=vmem, size = 0x400, scoped, tag = 'output window, operand 0, single buffered']
    %11 = vsyncpa [#allocation4], 0
    %12 = vsyncpa [#allocation7], 0
    %13 = vsyncpa [#allocation5], 0
    // Predicated region
    $region2: #{tpu_custom_call.1} parent=1 // pred_check
      _
    $region3: #{tpu_custom_call.1} parent=1 // pred_check_branch
      %15 = sbr.rel (0) target = $region5
    $region4: #{tpu_custom_call.1} parent=1 // pred_region
      %17 = vsyncadd [#allocation4], 0
      %s18 = sshll.u32 %s0, 4
      %s19 = int_to_ptr.hbm [resolvable:$true] %s18
      %s20 = sshll.u32 [#allocation3], 4
      %s21 = int_to_ptr.vmem [resolvable:$true] %s20
      %26 = dma.hbm_to_vmem [thread:$0]  %s19, 256, %s21, [#allocation4], 128, 128, 8
    $region5: #{tpu_custom_call.1} parent=1 // pred_fallthru
      _
    // Predicated region
    $region6: #{tpu_custom_call.1} parent=1 // pred_check
      _
    $region7: #{tpu_custom_call.1} parent=1 // pred_check_branch
      %28 = sbr.rel (0) target = $region9
    $region8: #{tpu_custom_call.1} parent=1 // pred_region
      _
    $region9: #{tpu_custom_call.1} parent=1 // pred_fallthru
      _
    // Predicated region
    $region10: #{tpu_custom_call.1} parent=1 // pred_check
      _
    $region11: #{tpu_custom_call.1} parent=1 // pred_check_branch
      %30 = sbr.rel (0) target = $region13
    $region12: #{tpu_custom_call.1} parent=1 // pred_region
      _
    $region13: #{tpu_custom_call.1} parent=1 // pred_fallthru
      _
    // Predicated region
    $region14: #{tpu_custom_call.1} parent=1 // pred_check
      _
    $region15: #{tpu_custom_call.1} parent=1 // pred_check_branch
      %32 = sbr.rel (0) target = $region17
    $region16: #{tpu_custom_call.1} parent=1 // pred_region
      %34 = vsyncadd [#allocation7], 0
      %s35 = sshll.u32 %s3, 4
      %s36 = int_to_ptr.hbm [resolvable:$true] %s35
      %s37 = sshll.u32 [#allocation6], 4
      %s38 = int_to_ptr.vmem [resolvable:$true] %s37
      %43 = dma.hbm_to_vmem [thread:$0]  %s36, 512, %s38, [#allocation7], 128, 128, 8
    $region17: #{tpu_custom_call.1} parent=1 // pred_fallthru
      _
    // Predicated region
    $region18: #{tpu_custom_call.1} parent=1 // pred_check
      _
    $region19: #{tpu_custom_call.1} parent=1 // pred_check_branch
      %45 = sbr.rel (0) target = $region21
    $region20: #{tpu_custom_call.1} parent=1 // pred_region
      _
    $region21: #{tpu_custom_call.1} parent=1 // pred_fallthru
      _
    // Predicated region
    $region22: #{tpu_custom_call.1} parent=1 // pred_check
      _
    $region23: #{tpu_custom_call.1} parent=1 // pred_check_branch
      %47 = sbr.rel (0) target = $region25
    $region24: #{tpu_custom_call.1} parent=1 // pred_region
      %49 = dma.done [#allocation4], 256
    $region25: #{tpu_custom_call.1} parent=1 // pred_fallthru
      _
    // Predicated region
    $region26: #{tpu_custom_call.1} parent=1 // pred_check
      _
    $region27: #{tpu_custom_call.1} parent=1 // pred_check_branch
      %51 = sbr.rel (0) target = $region29
    $region28: #{tpu_custom_call.1} parent=1 // pred_region
      %53 = dma.done [#allocation7], 512
    $region29: #{tpu_custom_call.1} parent=1 // pred_fallthru
      _
    %v54 = vld [vmem:[#allocation3] sm:$0xff]
    %v55 = vld [vmem:[#allocation3 + $0x8] sm:$0xff]
    %v56 = vld [vmem:[%s1] sm:$0xff]
    %58 = vset.pattern.permute.xlu0 0
    %59 = vperm.xlu0 %58, %v56
    %v60 = vpop.permute.xlu0 %59
    %v62 = vmul.f32 %v54, %v60
    %v63 = vmul.f32 %v55, %v60
    %vm64 = vcmask 261120
    %v65 = vsel %vm64, %v62, 0.0
    %v66 = vrot.slane %v65, 4
    %v67 = vadd.f32 %v65, %v66
    %v68 = vrot.slane %v67, 2
    %v69 = vadd.f32 %v67, %v68
    %v70 = vrot.slane %v69, 1
    %v71 = vadd.f32 %v69, %v70
    %v72 = vsel %vm64, %v63, 0.0
    %v73 = vrot.slane %v72, 4
    %v74 = vadd.f32 %v72, %v73
    %v75 = vrot.slane %v74, 2
    %v76 = vadd.f32 %v74, %v75
    %v77 = vrot.slane %v76, 1
    %v78 = vadd.f32 %v76, %v77
    %s79 = sld [smem:[#allocation2]]
    %v80 = vstv %s79
    %v81 = vadd.f32 %v71, %v80
    %v82 = vadd.f32 %v78, %v80
    %v83 = vld [vmem:[#allocation6] sm:$0xff]
    %v84 = vld [vmem:[#allocation6 + $0x8] sm:$0xff]
    %v85 = vld [vmem:[#allocation6 + $0x10] sm:$0xff]
    %v86 = vld [vmem:[#allocation6 + $0x18] sm:$0xff]
    %v87 = vld [vmem:[%s4] sm:$0x1]
    %v89 = vperm.slane %v87, 0
    %vm93 = vcmask 1041409
    %v94 = vsel %vm93, %v82, %v81
    %v95 = vsel %vm64, %v94, 0
    %97 = vmatpush.msra.mxu0 0.0
    %98 = vmatpush.msra.mxu0 0.0
    %99 = vmatpush.msra.mxu0 0.0
    %100 = vmatpush.msra.mxu0 0.0
    %101 = vmatpush.msra.mxu0 0.0
    %102 = vmatpush.msra.mxu0 0.0
    %103 = vmatpush.msra.mxu0 0.0
    %104 = vmatpush.msra.mxu0 0.0
    %105 = vmatpush.msra.mxu0 0.0
    %106 = vmatpush.msra.mxu0 0.0
    %107 = vmatpush.msra.mxu0 0.0
    %108 = vmatpush.msra.mxu0 0.0
    %109 = vmatpush.msra.mxu0 %v86
    %110 = vmatpush.msra.mxu0 %v85
    %111 = vmatpush.msra.mxu0 %v84
    %112 = vmatpush.msra.mxu0 %v83
    %113 = vmatmul.f32.gmra.mxu0 %v95
    %v114 = vpop.f32.mrf.mxu0
    %v115 = vadd.f32 %v89, %v114
    %116 = vdwg.mxu0
    %vm117 = vcmask 254976
    %118 = vst.msk [vmem:[#allocation8] sm:$0x3] %vm117, %v115
    // Predicated region
    $region30: #{tpu_custom_call.1} parent=1 // pred_check
      _
    $region31: #{tpu_custom_call.1} parent=1 // pred_check_branch
      %120 = sbr.rel (0) target = $region33
    $region32: #{tpu_custom_call.1} parent=1 // pred_region
      %122 = vsyncadd [#allocation5], 0
      %s124 = sshll.u32 [#allocation8], 4
      %s125 = int_to_ptr.vmem [resolvable:$true] %s124
      %s126 = sshll.u32 %s5, 4
      %s127 = int_to_ptr.hbm [resolvable:$true] %s126
      %129 = dma.vmem_to_hbm [thread:$0]  %s125, 32, %s127, [#allocation5]
    $region33: #{tpu_custom_call.1} parent=1 // pred_fallthru
      _
    // Predicated region
    $region34: #{tpu_custom_call.1} parent=1 // pred_check
      _
    $region35: #{tpu_custom_call.1} parent=1 // pred_check_branch
      %131 = sbr.rel (0) target = $region37
    $region36: #{tpu_custom_call.1} parent=1 // pred_region
      %133 = dma.done [#allocation5], 32
    $region37: #{tpu_custom_call.1} parent=1 // pred_fallthru
      _
    %134 = vsyncpa [#allocation4], 1
    %135 = vsyncpa [#allocation7], 1
    %136 = vsyncpa [#allocation5], 1

</llo_original>
